<compile_context>
chip_gen: v7x
topology: tpu7x:2x2x1
jax: 0.10.0
libtpu: 0.0.40
codegen_flags: <defaults>
</compile_context>

<pallas_src>
import math
import functools

import jax
import jax.numpy as jnp
from jax import lax
from jax.experimental import pallas as pl
from jax.experimental.pallas import tpu as pltpu

LANE = 128        # lane width: hidden dim (64) padded to one full vreg lane width
SUB_ROWS = 128    # rows per in-kernel sub-chunk (keeps f32 intermediates in vregs)


def _round_up(x, m):
    return (x + m - 1) // m * m


def _cdiv(a, b):
    return -(-a // b)


def qnetwork_kernel(x_ref, w1_ref, b1_ref, w2_ref, w3_ref, out_ref, *, chunk, nfull, rem):
    """relu(x@W1p + b1p) -> relu(h1@W2p) -> h2@W3p for one batch tile.

    b2/b3 are pre-folded into W2p/W3p via the "ones" hidden lane: b1p[ONE] == 1 and
    W2p[ONE, ONE] == 1 keep that lane exactly 1 through both ReLUs, so row ONE of W2p/W3p
    acts as the bias.  Padded hidden lanes stay exactly 0 and never touch real outputs.
    The batch tile is processed in `chunk`-row sub-chunks so the f32 intermediates stay in
    vregs instead of bouncing through VMEM.
    """
    def process(r0, rows):
        xs = x_ref[pl.ds(r0, rows), :]
        h1 = jnp.dot(xs, w1_ref[...], preferred_element_type=jnp.float32) + b1_ref[...]
        h1 = jnp.maximum(h1, 0.0).astype(x_ref.dtype)
        h2 = jnp.dot(h1, w2_ref[...], preferred_element_type=jnp.float32)
        h2 = jnp.maximum(h2, 0.0).astype(x_ref.dtype)
        q = jnp.dot(h2, w3_ref[...], preferred_element_type=jnp.float32)
        out_ref[pl.ds(r0, rows), :] = q.astype(out_ref.dtype)

    def body(c, carry):
        process(pl.multiple_of(c * chunk, chunk), chunk)
        return carry

    lax.fori_loop(0, nfull, body, 0, unroll=True)
    if rem:  # static remainder sub-chunk (size is a multiple of the sublane alignment)
        process(nfull * chunk, rem)


def _choose_tiles(B, align, tile_b):
    """Pick (tile_rows, n_tiles, padded_batch): <= ~align rows of padding per tile, and at
    least two (even number of) grid steps whenever there is enough work, so v7x's two
    TensorCores both get batch tiles."""
    Ba = _round_up(B, align)
    cap = max(align, min(tile_b, Ba))
    if Ba >= 2 * align:
        cap = min(cap, _round_up(_cdiv(Ba, 2), align))   # guarantee >= 2 tiles
    n_tiles = _cdiv(Ba, cap)
    if n_tiles > 1 and n_tiles % 2:
        n_tiles += 1                                     # even split across 2 TCs
    tb = _round_up(_cdiv(Ba, n_tiles), align)
    return tb, n_tiles, n_tiles * tb


@functools.partial(jax.jit, static_argnames=("tile_b", "stream_bf16"))
def qnetwork_forward(x, params, tile_b=1024, stream_bf16=False):
    """x: (B, S) f32.  params: w1 (S,H), b1 (H,), w2 (H,H), b2 (H,), w3 (H,A), b3 (A,)
    stored as (in, out), i.e. y = x @ W + b (== PyTorch x @ W.T + b).  Returns (B, A) f32."""
    B, S = x.shape
    H = params["w1"].shape[1]
    A = params["w3"].shape[1]
    Hp = _round_up(H + 1, LANE)   # hidden lanes padded to 128, incl. one spare "ones" lane
    ONE = H                       # index of the ones lane that carries b2/b3

    f32 = jnp.float32
    w1 = params["w1"].astype(f32); b1 = params["b1"].reshape(-1).astype(f32)
    w2 = params["w2"].astype(f32); b2 = params["b2"].reshape(-1).astype(f32)
    w3 = params["w3"].astype(f32); b3 = params["b3"].reshape(-1).astype(f32)

    # Lane-padded, bias-folded weights (tiny; built under jit, VMEM-resident across the grid).
    W1p = jnp.zeros((S, Hp), f32).at[:, :H].set(w1)
    B1p = jnp.zeros((1, Hp), f32).at[0, :H].set(b1).at[0, ONE].set(1.0)        # ones lane
    W2p = (jnp.zeros((Hp, Hp), f32).at[:H, :H].set(w2)
           .at[ONE, :H].set(b2).at[ONE, ONE].set(1.0))
    W3p = jnp.zeros((Hp, A), f32).at[:H, :].set(w3).at[ONE, :].set(b3)

    align = 16 if stream_bf16 else 8
    tb, n_tiles, b_pad = _choose_tiles(B, align, tile_b)
    x_p = jnp.pad(x.astype(f32), ((0, b_pad - B), (0, 0)))

    if stream_bf16:
        # TODO(synk): opt-in bf16 streaming (f32 accumulation kept); loosens exact f32 match.
        x_p, W1p, B1p, W2p, W3p = tuple(a.astype(jnp.bfloat16)
                                        for a in (x_p, W1p, B1p, W2p, W3p))

    chunk = min(SUB_ROWS, tb)
    nfull, rem = tb // chunk, tb % chunk

    w_spec = lambda shape: pl.BlockSpec(shape, lambda i: (0, 0))  # DMA'd once, stays in VMEM

    itemsize = x_p.dtype.itemsize
    flops = 2 * b_pad * (S * Hp + Hp * Hp + Hp * A)
    bytes_accessed = ((x_p.size + W1p.size + B1p.size + W2p.size + W3p.size) * itemsize
                      + b_pad * A * 4)

    out_p = pl.pallas_call(
        functools.partial(qnetwork_kernel, chunk=chunk, nfull=nfull, rem=rem),
        out_shape=jax.ShapeDtypeStruct((b_pad, A), f32),
        grid=(n_tiles,),
        in_specs=[
            pl.BlockSpec((tb, S), lambda i: (i, 0)),   # streamed over batch, double-buffered
            w_spec((S, Hp)), w_spec((1, Hp)), w_spec((Hp, Hp)), w_spec((Hp, A)),
        ],
        out_specs=pl.BlockSpec((tb, A), lambda i: (i, 0)),  # narrow output: 16x less writeback
        compiler_params=pltpu.CompilerParams(
            dimension_semantics=("parallel",),        # batch tiles shard across v7x's 2 TCs
        ),
        cost_estimate=pl.CostEstimate(
            flops=flops, transcendentals=0, bytes_accessed=bytes_accessed),
    )(x_p, W1p, B1p, W2p, W3p)

    return out_p[:B]


def init_qnetwork_params(key, state_size, action_size, hidden=64):
    """nn.Linear default init: U(-1/sqrt(fan_in), 1/sqrt(fan_in)); weights stored (in, out)."""
    def linear_init(k, fan_in, fan_out):
        kw, kb = jax.random.split(k)
        bound = 1.0 / math.sqrt(fan_in)
        w = jax.random.uniform(kw, (fan_in, fan_out), jnp.float32, -bound, bound)
        b = jax.random.uniform(kb, (fan_out,), jnp.float32, -bound, bound)
        return w, b

    k1, k2, k3 = jax.random.split(key, 3)
    w1, b1 = linear_init(k1, state_size, hidden)
    w2, b2 = linear_init(k2, hidden, hidden)
    w3, b3 = linear_init(k3, hidden, action_size)
    return {"w1": w1, "b1": b1, "w2": w2, "b2": b2, "w3": w3, "b3": b3}


def qnetwork_reference(x, p):
    """Pure-JAX reference for correctness checking."""
    h1 = jnp.maximum(x @ p["w1"] + p["b1"], 0.0)
    h2 = jnp.maximum(h1 @ p["w2"] + p["b2"], 0.0)
    return h2 @ p["w3"] + p["b3"]


if __name__ == "__main__":
    key = jax.random.PRNGKey(0)
    k_params, k_x = jax.random.split(key)

    state_size, action_size = 32, 8
    params = init_qnetwork_params(k_params, state_size, action_size)

    # single-tile, padded-batch, multi-tile, and multi-sub-chunk batch sizes
    for batch in (4, 13, 20, 600):
        kx = jax.random.fold_in(k_x, batch)
        x = jax.random.normal(kx, (batch, state_size), dtype=jnp.float32)

        out = jax.block_until_ready(qnetwork_forward(x, params))
        ref = qnetwork_reference(x, params)

        assert out.shape == (batch, action_size), out.shape
        assert jnp.allclose(out, ref, atol=2e-5, rtol=2e-5), \
            f"mismatch vs reference at batch={batch}"

    print("KERNEL_OK")
</pallas_src>

<mosaic_0001>
module attributes {stable_mosaic.version = 11 : i64} {
  func.func @qnetwork_kernel(%arg0: i32, %arg1: memref<8x32xf32, #tpu.memory_space<vmem>>, %arg2: memref<32x128xf32, #tpu.memory_space<vmem>>, %arg3: memref<1x128xf32, #tpu.memory_space<vmem>>, %arg4: memref<128x128xf32, #tpu.memory_space<vmem>>, %arg5: memref<128x8xf32, #tpu.memory_space<vmem>>, %arg6: memref<8x8xf32, #tpu.memory_space<vmem>>) attributes {dimension_semantics = [#tpu.dimension_semantics<parallel>], iteration_bounds = array<i64: 1>, scalar_prefetch = 0 : i64, scratch_operands = 0 : i64, tpu.core_type = #tpu.core_type<tc>, window_params = [{transform_indices = @transform_0, window_bounds = array<i64: 8, 32>}, {pipeline_mode = #tpu.pipeline_mode<synchronous>, transform_indices = @transform_1, window_bounds = array<i64: 32, 128>}, {pipeline_mode = #tpu.pipeline_mode<synchronous>, transform_indices = @transform_2, window_bounds = array<i64: 1, 128>}, {pipeline_mode = #tpu.pipeline_mode<synchronous>, transform_indices = @transform_3, window_bounds = array<i64: 128, 128>}, {pipeline_mode = #tpu.pipeline_mode<synchronous>, transform_indices = @transform_4, window_bounds = array<i64: 128, 8>}, {transform_indices = @transform_5, window_bounds = array<i64: 8, 8>}]} {
    %c0_i32 = arith.constant 0 : i32
    %c8_i32 = arith.constant 8 : i32
    %0 = arith.muli %c0_i32, %c8_i32 : i32
    %1 = tpu.assume_multiple %0, 8 : i32
    %2 = arith.index_cast %1 : i32 to index
    %c0 = arith.constant 0 : index
    %3 = vector.load %arg1[%2, %c0] : memref<8x32xf32, #tpu.memory_space<vmem>>, vector<8x32xf32>
    %c0_0 = arith.constant 0 : index
    %c0_1 = arith.constant 0 : index
    %4 = vector.load %arg2[%c0_0, %c0_1] : memref<32x128xf32, #tpu.memory_space<vmem>>, vector<32x128xf32>
    %cst = arith.constant dense<0.000000e+00> : vector<8x128xf32>
    %5 = tpu.matmul %3, %4, %cst {dimension_numbers = #tpu.dot_dimension_numbers<[1], [0], [0], [1], [0, 0, 1, 1], [], []>} : vector<8x32xf32>, vector<32x128xf32>, vector<8x128xf32> -> vector<8x128xf32>
    %c0_2 = arith.constant 0 : index
    %c0_3 = arith.constant 0 : index
    %6 = vector.load %arg3[%c0_2, %c0_3] : memref<1x128xf32, #tpu.memory_space<vmem>>, vector<1x128xf32>
    %7 = vector.broadcast %6 : vector<1x128xf32> to vector<8x128xf32>
    %8 = arith.addf %5, %7 : vector<8x128xf32>
    %cst_4 = arith.constant 0.000000e+00 : f32
    %9 = vector.broadcast %cst_4 : f32 to vector<8x128xf32>
    %10 = arith.maximumf %8, %9 : vector<8x128xf32>
    %c0_5 = arith.constant 0 : index
    %c0_6 = arith.constant 0 : index
    %11 = vector.load %arg4[%c0_5, %c0_6] : memref<128x128xf32, #tpu.memory_space<vmem>>, vector<128x128xf32>
    %cst_7 = arith.constant dense<0.000000e+00> : vector<8x128xf32>
    %12 = tpu.matmul %10, %11, %cst_7 {dimension_numbers = #tpu.dot_dimension_numbers<[1], [0], [0], [1], [0, 0, 1, 1], [], []>} : vector<8x128xf32>, vector<128x128xf32>, vector<8x128xf32> -> vector<8x128xf32>
    %cst_8 = arith.constant 0.000000e+00 : f32
    %13 = vector.broadcast %cst_8 : f32 to vector<8x128xf32>
    %14 = arith.maximumf %12, %13 : vector<8x128xf32>
    %c0_9 = arith.constant 0 : index
    %c0_10 = arith.constant 0 : index
    %15 = vector.load %arg5[%c0_9, %c0_10] : memref<128x8xf32, #tpu.memory_space<vmem>>, vector<128x8xf32>
    %cst_11 = arith.constant dense<0.000000e+00> : vector<8x8xf32>
    %16 = tpu.matmul %14, %15, %cst_11 {dimension_numbers = #tpu.dot_dimension_numbers<[1], [0], [0], [1], [0, 0, 1, 1], [], []>} : vector<8x128xf32>, vector<128x8xf32>, vector<8x8xf32> -> vector<8x8xf32>
    %17 = arith.index_cast %1 : i32 to index
    %c0_12 = arith.constant 0 : index
    %18 = vector.load %arg6[%17, %c0_12] : memref<8x8xf32, #tpu.memory_space<vmem>>, vector<8x8xf32>
    tpu.vector_store %arg6[%17, %c0_12], %16 {strides = array<i32>} : memref<8x8xf32, #tpu.memory_space<vmem>>, vector<8x8xf32>,
    %c1_i32 = arith.constant 1 : i32
    return
  }
  func.func @transform_0(%arg0: i32) -> (i32, i32) {
    %c0_i32 = arith.constant 0 : i32
    %c0_i32_0 = arith.constant 0 : i32
    return %arg0, %c0_i32 : i32, i32
  }
  func.func @transform_1(%arg0: i32) -> (i32, i32) {
    %c0_i32 = arith.constant 0 : i32
    %c0_i32_0 = arith.constant 0 : i32
    %c0_i32_1 = arith.constant 0 : i32
    return %c0_i32, %c0_i32_0 : i32, i32
  }
  func.func @transform_2(%arg0: i32) -> (i32, i32) {
    %c0_i32 = arith.constant 0 : i32
    %c0_i32_0 = arith.constant 0 : i32
    %c0_i32_1 = arith.constant 0 : i32
    return %c0_i32, %c0_i32_0 : i32, i32
  }
  func.func @transform_3(%arg0: i32) -> (i32, i32) {
    %c0_i32 = arith.constant 0 : i32
    %c0_i32_0 = arith.constant 0 : i32
    %c0_i32_1 = arith.constant 0 : i32
    return %c0_i32, %c0_i32_0 : i32, i32
  }
  func.func @transform_4(%arg0: i32) -> (i32, i32) {
    %c0_i32 = arith.constant 0 : i32
    %c0_i32_0 = arith.constant 0 : i32
    %c0_i32_1 = arith.constant 0 : i32
    return %c0_i32, %c0_i32_0 : i32, i32
  }
  func.func @transform_5(%arg0: i32) -> (i32, i32) {
    %c0_i32 = arith.constant 0 : i32
    %c0_i32_0 = arith.constant 0 : i32
    return %arg0, %c0_i32 : i32, i32
  }
}

</mosaic_0001>

<llo_original>
// kernel: qnetwork_forward.1
$region0: #{qnetwork_forward.1}
  #allocation0 [shape = 'u32[]', space=smem, size = 0x4, offset = 0x4, fixed_abs, tag = 'smem constant byte address 0x4 - core index']
  #allocation1 [shape = 'u32[144,128]{1,0:T(1,128)}', space=vmem, size = 0x12000, scoped, tag = 'internal scratch']
  %s0 = inlined_call_operand.vmem [shape: f32[8,32], index: 0, kind: input, shape index: {}]
  %s1 = inlined_call_operand.vmem [shape: f32[32,128], index: 1, kind: input, shape index: {}]
  %s2 = inlined_call_operand.vmem [shape: f32[1,128], index: 2, kind: input, shape index: {}]
  %s3 = inlined_call_operand.vmem [shape: f32[128,128], index: 3, kind: input, shape index: {}]
  %s4 = inlined_call_operand.vmem [shape: f32[128,8], index: 4, kind: input, shape index: {}]
  %s5 = inlined_call_operand.vmem [shape: f32[8,8], index: 5, kind: output, shape index: {}]
  %s6 = sld [smem:[#allocation0]]
  $region30: #{qnetwork_forward.1} parent=0
    _
  %s8 = ssub.s32 1, %s6
  %s9 = scalar_select 0, %s8, %s6
  // Predicated region
  $region2: #{qnetwork_forward.1} parent=0 // pred_check
    _
  $region3: #{qnetwork_forward.1} parent=0 // pred_check_branch
    %11 = sbr.rel (0) target = $region5
  $region4: #{qnetwork_forward.1} parent=0 // pred_region
    _
  $region5: #{qnetwork_forward.1} parent=0 // pred_fallthru
    _
  // Predicated region
  $region6: #{qnetwork_forward.1} parent=0 // pred_check
    _
  $region7: #{qnetwork_forward.1} parent=0 // pred_check_branch
    %13 = sbr.rel (0) target = $region9
  $region8: #{qnetwork_forward.1} parent=0 // pred_region
    _
  $region9: #{qnetwork_forward.1} parent=0 // pred_fallthru
    _
  // Predicated region
  $region10: #{qnetwork_forward.1} parent=0 // pred_check
    _
  $region11: #{qnetwork_forward.1} parent=0 // pred_check_branch
    %15 = sbr.rel (0) target = $region13
  $region12: #{qnetwork_forward.1} parent=0 // pred_region
    _
  $region13: #{qnetwork_forward.1} parent=0 // pred_fallthru
    _
  // Predicated region
  $region14: #{qnetwork_forward.1} parent=0 // pred_check
    _
  $region15: #{qnetwork_forward.1} parent=0 // pred_check_branch
    %17 = sbr.rel (0) target = $region17
  $region16: #{qnetwork_forward.1} parent=0 // pred_region
    _
  $region17: #{qnetwork_forward.1} parent=0 // pred_fallthru
    _
  // Predicated region
  $region18: #{qnetwork_forward.1} parent=0 // pred_check
    _
  $region19: #{qnetwork_forward.1} parent=0 // pred_check_branch
    %19 = sbr.rel (0) target = $region21
  $region20: #{qnetwork_forward.1} parent=0 // pred_region
    _
  $region21: #{qnetwork_forward.1} parent=0 // pred_fallthru
    _
  %v20 = vld [vmem:[%s0] sm:$0xff]
  %v21 = vld [vmem:[%s1] sm:$0xff]
  %v22 = vld [vmem:[%s1 + $0x8] sm:$0xff]
  %v23 = vld [vmem:[%s1 + $0x10] sm:$0xff]
  %v24 = vld [vmem:[%s1 + $0x18] sm:$0xff]
  %v25 = vld [vmem:[%s2] sm:$0x1]
  %v27 = vlaneseq
  %v28 = vshrl.u32 %v27, 7
  %v29 = vsub.s32 0, %v28
  %v30 = vrot.slane %v25, %v29
  %vm32 = vcmask 261120
  %v34 = vsel %vm32, %v20, 0
  %36 = vmatprep.subr.mxu0 0.0
  %37 = vmatpush1.msra.mxu0 %v21
  %38 = vmatprep.subr.mxu0 0.0
  %39 = vmatpush1.msra.mxu0 %v22
  %40 = vmatprep.subr.mxu0 0.0
  %41 = vmatpush1.msra.mxu0 %v23
  %42 = vmatprep.subr.mxu0 0.0
  %43 = vmatpush1.msra.mxu0 %v24
  %44 = vmatprep.subr.mxu0 0.0
  %45 = vmatpush1.msra.mxu0 0.0
  %46 = vmatprep.subr.mxu0 0.0
  %47 = vmatpush1.msra.mxu0 0.0
  %48 = vmatprep.subr.mxu0 0.0
  %49 = vmatpush1.msra.mxu0 0.0
  %50 = vmatprep.subr.mxu0 0.0
  %51 = vmatpush1.msra.mxu0 0.0
  %52 = vmatprep.subr.mxu0 0.0
  %53 = vmatpush1.msra.mxu0 0.0
  %54 = vmatprep.subr.mxu0 0.0
  %55 = vmatpush1.msra.mxu0 0.0
  %56 = vmatprep.subr.mxu0 0.0
  %57 = vmatpush1.msra.mxu0 0.0
  %58 = vmatprep.subr.mxu0 0.0
  %59 = vmatpush1.msra.mxu0 0.0
  %60 = vmatprep.subr.mxu0 0.0
  %61 = vmatpush1.msra.mxu0 0.0
  %62 = vmatprep.subr.mxu0 0.0
  %63 = vmatpush1.msra.mxu0 0.0
  %64 = vmatprep.subr.mxu0 0.0
  %65 = vmatpush1.msra.mxu0 0.0
  %66 = vmatprep.subr.mxu0 0.0
  %67 = vmatpush1.msra.mxu0 0.0
  %68 = vmatprep.subr.mxu0 0.0
  %69 = vmatpush1.msra.mxu0 0.0
  %70 = vmatprep.subr.mxu0 0.0
  %71 = vmatpush1.msra.mxu0 0.0
  %72 = vmatprep.subr.mxu0 0.0
  %73 = vmatpush1.msra.mxu0 0.0
  %74 = vmatprep.subr.mxu0 0.0
  %75 = vmatpush1.msra.mxu0 0.0
  %76 = vmatprep.subr.mxu0 0.0
  %77 = vmatpush1.msra.mxu0 0.0
  %78 = vmatprep.subr.mxu0 0.0
  %79 = vmatpush1.msra.mxu0 0.0
  %80 = vmatprep.subr.mxu0 0.0
  %81 = vmatpush1.msra.mxu0 0.0
  %82 = vmatprep.subr.mxu0 0.0
  %83 = vmatpush1.msra.mxu0 0.0
  %84 = vmatprep.subr.mxu0 0.0
  %85 = vmatpush1.msra.mxu0 0.0
  %86 = vmatprep.subr.mxu0 0.0
  %87 = vmatpush1.msra.mxu0 0.0
  %88 = vmatprep.subr.mxu0 0.0
  %89 = vmatpush1.msra.mxu0 0.0
  %90 = vmatprep.subr.mxu0 0.0
  %91 = vmatpush1.msra.mxu0 0.0
  %92 = vmatprep.subr.mxu0 0.0
  %93 = vmatpush1.msra.mxu0 0.0
  %94 = vmatprep.subr.mxu0 0.0
  %95 = vmatpush1.msra.mxu0 0.0
  %96 = vmatprep.subr.mxu0 0.0
  %97 = vmatpush1.msra.mxu0 0.0
  %98 = vmatprep.subr.mxu0 0.0
  %99 = vmatpush1.msra.mxu0 0.0
  %100 = vmatprep.mubr.f32.mxu0 0.0
  %101 = vmatmul.mubr.f32.gmra.mrb[0].mxu0 %v34
  %v102 = vpop.f32.mrb[0].mxu0
  %v103 = vadd.f32 %v30, %v102
  %v104 = vpop.f32.mrb[0].mxu0
  %105 = vdwg.mxu0
  %v106 = vmax.f32 %v103, 0.0
  %v107 = vld [vmem:[%s3] sm:$0xff]
  %v108 = vld [vmem:[%s3 + $0x8] sm:$0xff]
  %v109 = vld [vmem:[%s3 + $0x10] sm:$0xff]
  %v110 = vld [vmem:[%s3 + $0x18] sm:$0xff]
  %v111 = vld [vmem:[%s3 + $0x20] sm:$0xff]
  %v112 = vld [vmem:[%s3 + $0x28] sm:$0xff]
  %v113 = vld [vmem:[%s3 + $0x30] sm:$0xff]
  %v114 = vld [vmem:[%s3 + $0x38] sm:$0xff]
  %v115 = vld [vmem:[%s3 + $0x40] sm:$0xff]
  %v116 = vld [vmem:[%s3 + $0x48] sm:$0xff]
  %v117 = vld [vmem:[%s3 + $0x50] sm:$0xff]
  %v118 = vld [vmem:[%s3 + $0x58] sm:$0xff]
  %v119 = vld [vmem:[%s3 + $0x60] sm:$0xff]
  %v120 = vld [vmem:[%s3 + $0x68] sm:$0xff]
  %v121 = vld [vmem:[%s3 + $0x70] sm:$0xff]
  %v122 = vld [vmem:[%s3 + $0x78] sm:$0xff]
  %123 = vmatprep.subr.mxu0 0.0
  %124 = vmatpush1.msra.mxu0 %v107
  %125 = vmatprep.subr.mxu0 0.0
  %126 = vmatpush1.msra.mxu0 %v108
  %127 = vmatprep.subr.mxu0 0.0
  %128 = vmatpush1.msra.mxu0 %v109
  %129 = vmatprep.subr.mxu0 0.0
  %130 = vmatpush1.msra.mxu0 %v110
  %131 = vmatprep.subr.mxu0 0.0
  %132 = vmatpush1.msra.mxu0 %v111
  %133 = vmatprep.subr.mxu0 0.0
  %134 = vmatpush1.msra.mxu0 %v112
  %135 = vmatprep.subr.mxu0 0.0
  %136 = vmatpush1.msra.mxu0 %v113
  %137 = vmatprep.subr.mxu0 0.0
  %138 = vmatpush1.msra.mxu0 %v114
  %139 = vmatprep.subr.mxu0 0.0
  %140 = vmatpush1.msra.mxu0 %v115
  %141 = vmatprep.subr.mxu0 0.0
  %142 = vmatpush1.msra.mxu0 %v116
  %143 = vmatprep.subr.mxu0 0.0
  %144 = vmatpush1.msra.mxu0 %v117
  %145 = vmatprep.subr.mxu0 0.0
  %146 = vmatpush1.msra.mxu0 %v118
  %147 = vmatprep.subr.mxu0 0.0
  %148 = vmatpush1.msra.mxu0 %v119
  %149 = vmatprep.subr.mxu0 0.0
  %150 = vmatpush1.msra.mxu0 %v120
  %151 = vmatprep.subr.mxu0 0.0
  %152 = vmatpush1.msra.mxu0 %v121
  %153 = vmatprep.subr.mxu0 0.0
  %154 = vmatpush1.msra.mxu0 %v122
  %155 = vmatprep.subr.mxu0 0.0
  %156 = vmatpush1.msra.mxu0 0.0
  %157 = vmatprep.subr.mxu0 0.0
  %158 = vmatpush1.msra.mxu0 0.0
  %159 = vmatprep.subr.mxu0 0.0
  %160 = vmatpush1.msra.mxu0 0.0
  %161 = vmatprep.subr.mxu0 0.0
  %162 = vmatpush1.msra.mxu0 0.0
  %163 = vmatprep.subr.mxu0 0.0
  %164 = vmatpush1.msra.mxu0 0.0
  %165 = vmatprep.subr.mxu0 0.0
  %166 = vmatpush1.msra.mxu0 0.0
  %167 = vmatprep.subr.mxu0 0.0
  %168 = vmatpush1.msra.mxu0 0.0
  %169 = vmatprep.subr.mxu0 0.0
  %170 = vmatpush1.msra.mxu0 0.0
  %171 = vmatprep.subr.mxu0 0.0
  %172 = vmatpush1.msra.mxu0 0.0
  %173 = vmatprep.subr.mxu0 0.0
  %174 = vmatpush1.msra.mxu0 0.0
  %175 = vmatprep.subr.mxu0 0.0
  %176 = vmatpush1.msra.mxu0 0.0
  %177 = vmatprep.subr.mxu0 0.0
  %178 = vmatpush1.msra.mxu0 0.0
  %179 = vmatprep.subr.mxu0 0.0
  %180 = vmatpush1.msra.mxu0 0.0
  %181 = vmatprep.subr.mxu0 0.0
  %182 = vmatpush1.msra.mxu0 0.0
  %183 = vmatprep.subr.mxu0 0.0
  %184 = vmatpush1.msra.mxu0 0.0
  %185 = vmatprep.subr.mxu0 0.0
  %186 = vmatpush1.msra.mxu0 0.0
  %187 = vmatprep.mubr.f32.mxu0 0.0
  %188 = vmatmul.mubr.f32.gmra.mrb[0].mxu0 %v106
  %v189 = vpop.f32.mrb[0].mxu0
  %v190 = vadd.f32 0.0, %v189
  %v191 = vpop.f32.mrb[0].mxu0
  %192 = vdwg.mxu0
  %v193 = vmax.f32 %v190, 0.0
  %v194 = vld [vmem:[%s4] sm:$0xff]
  %v195 = vld [vmem:[%s4 + $0x8] sm:$0xff]
  %v196 = vld [vmem:[%s4 + $0x10] sm:$0xff]
  %v197 = vld [vmem:[%s4 + $0x18] sm:$0xff]
  %v198 = vld [vmem:[%s4 + $0x20] sm:$0xff]
  %v199 = vld [vmem:[%s4 + $0x28] sm:$0xff]
  %v200 = vld [vmem:[%s4 + $0x30] sm:$0xff]
  %v201 = vld [vmem:[%s4 + $0x38] sm:$0xff]
  %v202 = vld [vmem:[%s4 + $0x40] sm:$0xff]
  %v203 = vld [vmem:[%s4 + $0x48] sm:$0xff]
  %v204 = vld [vmem:[%s4 + $0x50] sm:$0xff]
  %v205 = vld [vmem:[%s4 + $0x58] sm:$0xff]
  %v206 = vld [vmem:[%s4 + $0x60] sm:$0xff]
  %v207 = vld [vmem:[%s4 + $0x68] sm:$0xff]
  %v208 = vld [vmem:[%s4 + $0x70] sm:$0xff]
  %v209 = vld [vmem:[%s4 + $0x78] sm:$0xff]
  %210 = vmatprep.subr.mxu0 0.0
  %211 = vmatpush1.msra.mxu0 %v194
  %212 = vmatprep.subr.mxu0 0.0
  %213 = vmatpush1.msra.mxu0 %v195
  %214 = vmatprep.subr.mxu0 0.0
  %215 = vmatpush1.msra.mxu0 %v196
  %216 = vmatprep.subr.mxu0 0.0
  %217 = vmatpush1.msra.mxu0 %v197
  %218 = vmatprep.subr.mxu0 0.0
  %219 = vmatpush1.msra.mxu0 %v198
  %220 = vmatprep.subr.mxu0 0.0
  %221 = vmatpush1.msra.mxu0 %v199
  %222 = vmatprep.subr.mxu0 0.0
  %223 = vmatpush1.msra.mxu0 %v200
  %224 = vmatprep.subr.mxu0 0.0
  %225 = vmatpush1.msra.mxu0 %v201
  %226 = vmatprep.subr.mxu0 0.0
  %227 = vmatpush1.msra.mxu0 %v202
  %228 = vmatprep.subr.mxu0 0.0
  %229 = vmatpush1.msra.mxu0 %v203
  %230 = vmatprep.subr.mxu0 0.0
  %231 = vmatpush1.msra.mxu0 %v204
  %232 = vmatprep.subr.mxu0 0.0
  %233 = vmatpush1.msra.mxu0 %v205
  %234 = vmatprep.subr.mxu0 0.0
  %235 = vmatpush1.msra.mxu0 %v206
  %236 = vmatprep.subr.mxu0 0.0
  %237 = vmatpush1.msra.mxu0 %v207
  %238 = vmatprep.subr.mxu0 0.0
  %239 = vmatpush1.msra.mxu0 %v208
  %240 = vmatprep.subr.mxu0 0.0
  %241 = vmatpush1.msra.mxu0 %v209
  %242 = vmatprep.subr.mxu0 0.0
  %243 = vmatpush1.msra.mxu0 0.0
  %244 = vmatprep.subr.mxu0 0.0
  %245 = vmatpush1.msra.mxu0 0.0
  %246 = vmatprep.subr.mxu0 0.0
  %247 = vmatpush1.msra.mxu0 0.0
  %248 = vmatprep.subr.mxu0 0.0
  %249 = vmatpush1.msra.mxu0 0.0
  %250 = vmatprep.subr.mxu0 0.0
  %251 = vmatpush1.msra.mxu0 0.0
  %252 = vmatprep.subr.mxu0 0.0
  %253 = vmatpush1.msra.mxu0 0.0
  %254 = vmatprep.subr.mxu0 0.0
  %255 = vmatpush1.msra.mxu0 0.0
  %256 = vmatprep.subr.mxu0 0.0
  %257 = vmatpush1.msra.mxu0 0.0
  %258 = vmatprep.subr.mxu0 0.0
  %259 = vmatpush1.msra.mxu0 0.0
  %260 = vmatprep.subr.mxu0 0.0
  %261 = vmatpush1.msra.mxu0 0.0
  %262 = vmatprep.subr.mxu0 0.0
  %263 = vmatpush1.msra.mxu0 0.0
  %264 = vmatprep.subr.mxu0 0.0
  %265 = vmatpush1.msra.mxu0 0.0
  %266 = vmatprep.subr.mxu0 0.0
  %267 = vmatpush1.msra.mxu0 0.0
  %268 = vmatprep.subr.mxu0 0.0
  %269 = vmatpush1.msra.mxu0 0.0
  %270 = vmatprep.subr.mxu0 0.0
  %271 = vmatpush1.msra.mxu0 0.0
  %272 = vmatprep.subr.mxu0 0.0
  %273 = vmatpush1.msra.mxu0 0.0
  %274 = vmatprep.mubr.f32.mxu0 0.0
  %275 = vmatmul.mubr.f32.gmra.mrb[0].mxu0 %v193
  %v276 = vpop.f32.mrb[0].mxu0
  %v277 = vadd.f32 0.0, %v276
  %v278 = vpop.f32.mrb[0].mxu0
  %279 = vdwg.mxu0
  %vm280 = vcmask 64512
  %281 = vst.msk [vmem:[%s5] sm:$0xff] %vm280, %v277
  // Predicated region
  $region22: #{qnetwork_forward.1} parent=0 // pred_check
    _
  $region23: #{qnetwork_forward.1} parent=0 // pred_check_branch
    %283 = sbr.rel (0) target = $region25
  $region24: #{qnetwork_forward.1} parent=0 // pred_region
    _
  $region25: #{qnetwork_forward.1} parent=0 // pred_fallthru
    _
  // Predicated region
  $region26: #{qnetwork_forward.1} parent=0 // pred_check
    _
  $region27: #{qnetwork_forward.1} parent=0 // pred_check_branch
    %285 = sbr.rel (0) target = $region29
  $region28: #{qnetwork_forward.1} parent=0 // pred_region
    _
  $region29: #{qnetwork_forward.1} parent=0 // pred_fallthru
    _

</llo_original>
